<compile_context>
chip_gen: v7x
topology: tpu7x:2x2x1
jax: 0.10.0
libtpu: 0.0.40
codegen_flags: <defaults>
</compile_context>

<pallas_src>
import functools

import jax
import jax.numpy as jnp
from jax.experimental import pallas as pl
from jax.experimental.pallas import tpu as pltpu


def _attention_kernel(enc_ref, dec_ref, wenc_ref, benc_ref, wdec_ref, bdec_ref,
                      wfull_ref, awe_ref, alpha_ref, *, num_pixels):
    tb, p_pad, e_dim = enc_ref.shape

    enc = enc_ref[...]                                            # (tb, Pp, E) bf16

    # encoder_att: Linear(E -> A) for every pixel on the MXU. The (tb, Pp)
    # merge is a free view because the wrapper pads Pp to a multiple of 16
    # (bf16 sublane tile) — no VMEM copy is materialized.
    att1 = jnp.dot(enc.reshape(tb * p_pad, e_dim), wenc_ref[...],
                   preferred_element_type=jnp.float32)            # (tb*Pp, A) f32
    att1 = (att1 + benc_ref[...]).reshape(tb, p_pad, -1)          # (tb, Pp, A)

    # decoder_att: Linear(D -> A) on the hidden state (tiny MXU dot).
    att2 = jnp.dot(dec_ref[...].astype(wdec_ref.dtype), wdec_ref[...],
                   preferred_element_type=jnp.float32) + bdec_ref[...]   # (tb, A)

    # Additive score + ReLU (VPU); att2 broadcast over the pixel axis.
    h = jnp.maximum(att1 + att2[:, None, :], 0.0)                 # (tb, Pp, A) f32

    # full_att: Linear(A -> 1) == weighted lane reduce over A. b_full adds the
    # same constant to every pixel of a row, so it cancels in the softmax and
    # is dropped. (If XLU saturates on v6e this reduce can be swapped for an
    # MXU dot against an (A, 1) column.)
    att = jnp.sum(h * wfull_ref[...], axis=-1)                    # (tb, Pp), P on lanes

    # Mask padded pixels so they receive zero attention weight.
    if p_pad != num_pixels:
        pix = jax.lax.broadcasted_iota(jnp.int32, (tb, p_pad), 1)
        att = jnp.where(pix < num_pixels, att, -1e30)

    # Softmax over pixels (lane axis), numerically stable; reciprocal on EUP.
    m = jnp.max(att, axis=-1, keepdims=True)                      # (tb, 1)
    e = jnp.exp(att - m)
    denom = jnp.sum(e, axis=-1, keepdims=True)
    alpha = e * pl.reciprocal(denom, approx=True)                 # (tb, Pp) f32

    # Lane-dense alpha store (pixels on lanes -> unmasked stores).
    alpha_ref[...] = alpha.astype(alpha_ref.dtype)

    # Attention-weighted encoding: awe[b] = alpha[b] @ enc[b]. Per-batch
    # (1, Pp) @ (Pp, E) mat-vecs on the MXU with f32 accumulation — avoids a
    # (tb, Pp, E) f32 broadcast-multiply temporary in VMEM.
    alpha_lo = alpha.astype(enc.dtype)
    awe_rows = [jnp.dot(alpha_lo[b:b + 1, :], enc[b],
                        preferred_element_type=jnp.float32)
                for b in range(tb)]                               # tb x (1, E)
    awe = jnp.concatenate(awe_rows, axis=0) if tb > 1 else awe_rows[0]
    awe_ref[...] = awe.astype(awe_ref.dtype)


def _pick_block_b(B, P_pad, E, D, A, vmem_cap):
    """VMEM-aware batch tile (generation-aware: v7x has 64 MiB, v5e/v6e 128)."""
    if B <= 8:
        return B  # single full-batch tile, grid of 1 (blocks equal full dims)
    per_row = (2 * P_pad * E * 2            # enc tile (bf16), double-buffered
               + 2 * 4 * (D + E + P_pad)    # dec in / awe / alpha out (f32), x2
               + 3 * P_pad * A * 4          # att1, h, h*wfull intermediates (f32)
               + 6 * P_pad * 4              # score / exp / alpha temporaries
               + 2 * (A + E) * 4)           # att2 / awe temporaries
    resident = (E * A + D * A) * 2 + 4 * A * 4
    budget = int(vmem_cap * 0.6) - resident
    bb = max(8, min((max(budget, 0) // per_row) // 8 * 8, 64))
    if B >= 16:
        # >= 2 grid steps so the "parallel" batch axis can shard across both
        # TensorCores on v7x (neutral on single-TC v5e/v6e).
        bb = min(bb, max(8, (B // 2) // 8 * 8))
    return bb


@functools.partial(jax.jit, static_argnames=("block_b",))
def attention_forward(encoder_out, decoder_hidden,
                      w_enc, b_enc, w_dec, b_dec, w_full, b_full,
                      *, block_b=None):
    """Fused additive attention.

    encoder_out: (B, P, E)   decoder_hidden: (B, D)
    w_enc (A, E), b_enc (A,) | w_dec (A, D), b_dec (A,) | w_full (1, A), b_full (1,)
    Returns (attention_weighted_encoding (B, E), alpha (B, P)).
    """
    B, P, E = encoder_out.shape
    D = decoder_hidden.shape[1]
    A = w_enc.shape[0]
    out_dtype = encoder_out.dtype
    out_isize = jnp.dtype(out_dtype).itemsize
    del b_full  # adds a per-row constant to every pixel score; cancels in softmax

    # Chip-aware VMEM capacity (v5e/v6e: 128 MiB, v7x: 64 MiB per TensorCore).
    try:
        vmem_cap = int(pltpu.get_tpu_info().vmem_capacity_bytes)
    except Exception:
        vmem_cap = 64 << 20  # conservative fallback

    # Pad the pixel axis to the bf16 sublane tile so in-kernel reshapes are
    # free views; padded pixels are masked out of the softmax in the kernel.
    P_pad = ((P + 15) // 16) * 16

    if block_b is None:
        block_b = _pick_block_b(B, P_pad, E, D, A, vmem_cap)

    B_pad = ((B + block_b - 1) // block_b) * block_b
    pad_b, pad_p = B_pad - B, P_pad - P
    enc = encoder_out
    dec = decoder_hidden
    if pad_b or pad_p:
        enc = jnp.pad(enc, ((0, pad_b), (0, pad_p), (0, 0)))
    if pad_b:
        dec = jnp.pad(dec, ((0, pad_b), (0, 0)))

    # bf16 streaming of the dominant operand + projection weights (native bf16
    # MXU, half the HBM traffic); accumulation stays f32 inside the kernel.
    enc_lo = enc.astype(jnp.bfloat16)
    dec32 = dec.astype(jnp.float32)
    wenc_t = w_enc.T.astype(jnp.bfloat16)            # (E, A)
    wdec_t = w_dec.T.astype(jnp.bfloat16)            # (D, A)
    benc_r = b_enc.reshape(1, A).astype(jnp.float32)
    bdec_r = b_dec.reshape(1, A).astype(jnp.float32)
    wfull_r = w_full.reshape(1, A).astype(jnp.float32)

    # Honest per-step VMEM estimate (streams double-buffered, weights single).
    est_bytes = (2 * block_b * P_pad * E * 2
                 + 2 * block_b * D * 4
                 + 2 * block_b * (E + P_pad) * out_isize
                 + (E * A + D * A) * 2 + 4 * A * 4
                 + 3 * block_b * P_pad * A * 4
                 + 6 * block_b * P_pad * 4
                 + 2 * block_b * (A + E) * 4)
    headroom = 16 << 20 if vmem_cap >= (96 << 20) else 8 << 20
    vmem_limit = int(min(vmem_cap - headroom, max(32 << 20, 2 * est_bytes)))

    cost = pl.CostEstimate(
        flops=int(2 * B_pad * P_pad * E * A + 2 * B_pad * D * A
                  + 2 * B_pad * P_pad * A + 2 * B_pad * P_pad * E),
        transcendentals=int(B_pad * P_pad),
        bytes_accessed=int(B_pad * P_pad * E * 2 + B_pad * D * 4
                           + (E * A + D * A) * 2 + 3 * A * 4
                           + B_pad * E * out_isize + B_pad * P_pad * out_isize),
    )

    grid = (B_pad // block_b,)
    const = lambda i: (0, 0)
    once = dict(pipeline_mode=pl.Buffered(1))  # resident weights: single buffer

    kernel = functools.partial(_attention_kernel, num_pixels=P)

    awe, alpha = pl.pallas_call(
        kernel,
        grid=grid,
        in_specs=[
            pl.BlockSpec((block_b, P_pad, E), lambda i: (i, 0, 0)),   # encoder tile
            pl.BlockSpec((block_b, D), lambda i: (i, 0)),             # decoder tile
            pl.BlockSpec((E, A), const, **once),                      # W_enc^T (bf16)
            pl.BlockSpec((1, A), const, **once),                      # b_enc
            pl.BlockSpec((D, A), const, **once),                      # W_dec^T (bf16)
            pl.BlockSpec((1, A), const, **once),                      # b_dec
            pl.BlockSpec((1, A), const, **once),                      # w_full row
        ],
        out_specs=(
            pl.BlockSpec((block_b, E), lambda i: (i, 0)),             # awe
            pl.BlockSpec((block_b, P_pad), lambda i: (i, 0)),         # alpha (lane-dense)
        ),
        out_shape=(
            jax.ShapeDtypeStruct((B_pad, E), out_dtype),
            jax.ShapeDtypeStruct((B_pad, P_pad), out_dtype),
        ),
        compiler_params=pltpu.CompilerParams(
            dimension_semantics=("parallel",),
            vmem_limit_bytes=vmem_limit),
        cost_estimate=cost,
    )(enc_lo, dec32, wenc_t, benc_r, wdec_t, bdec_r, wfull_r)

    return awe[:B], alpha[:B, :P]


if __name__ == "__main__":
    # Small shapes consistent with the module: 4x4 feature map -> 16 pixels.
    B, P = 2, 16            # batch, num_pixels
    E, D, A = 32, 32, 32    # encoder_dim, decoder_dim, attention_dim

    key = jax.random.PRNGKey(0)
    keys = jax.random.split(key, 8)

    encoder_out = jax.random.normal(keys[0], (B, P, E), dtype=jnp.float32)
    decoder_hidden = jax.random.normal(keys[1], (B, D), dtype=jnp.float32)

    # nn.Linear default init ~ U(-1/sqrt(fan_in), 1/sqrt(fan_in))
    def init_linear(kw, kb, out_f, in_f):
        bound = 1.0 / (in_f ** 0.5)
        w = jax.random.uniform(kw, (out_f, in_f), jnp.float32, -bound, bound)
        b = jax.random.uniform(kb, (out_f,), jnp.float32, -bound, bound)
        return w, b

    w_enc, b_enc = init_linear(keys[2], keys[3], A, E)
    w_dec, b_dec = init_linear(keys[4], keys[5], A, D)
    w_full, b_full = init_linear(keys[6], keys[7], 1, A)

    awe, alpha = attention_forward(encoder_out, decoder_hidden,
                                   w_enc, b_enc, w_dec, b_dec, w_full, b_full)
    awe, alpha = jax.block_until_ready((awe, alpha))

    # Pure-JAX f32 reference mirroring the PyTorch forward.
    att1 = encoder_out @ w_enc.T + b_enc
    att2 = decoder_hidden @ w_dec.T + b_dec
    h = jnp.maximum(att1 + att2[:, None, :], 0.0)
    att = (h @ w_full.T)[..., 0] + b_full[0]
    alpha_ref = jax.nn.softmax(att, axis=1)
    awe_ref = (encoder_out * alpha_ref[:, :, None]).sum(axis=1)

    assert awe.shape == (B, E) and alpha.shape == (B, P)
    # Softmax rows sum to 1 (loose: approx EUP reciprocal + bf16 streaming).
    assert jnp.allclose(jnp.sum(alpha, axis=1), 1.0, atol=1e-2)
    # Kernel streams/matmuls in bf16 with f32 accumulation vs. the f32 XLA
    # reference, so compare at a correspondingly loose tolerance.
    assert jnp.allclose(alpha, alpha_ref, atol=5e-2, rtol=5e-2)
    assert jnp.allclose(awe, awe_ref, atol=5e-2, rtol=5e-2)

    print("KERNEL_OK")
</pallas_src>

<mosaic_0001>
module attributes {stable_mosaic.version = 11 : i64} {
  func.func @_attention_kernel(%arg0: i32, %arg1: memref<2x16x32xbf16, #tpu.memory_space<vmem>>, %arg2: memref<2x32xf32, #tpu.memory_space<vmem>>, %arg3: memref<32x32xbf16, #tpu.memory_space<vmem>>, %arg4: memref<1x32xf32, #tpu.memory_space<vmem>>, %arg5: memref<32x32xbf16, #tpu.memory_space<vmem>>, %arg6: memref<1x32xf32, #tpu.memory_space<vmem>>, %arg7: memref<1x32xf32, #tpu.memory_space<vmem>>, %arg8: memref<2x32xf32, #tpu.memory_space<vmem>>, %arg9: memref<2x16xf32, #tpu.memory_space<vmem>>) attributes {dimension_semantics = [#tpu.dimension_semantics<parallel>], iteration_bounds = array<i64: 1>, scalar_prefetch = 0 : i64, scratch_operands = 0 : i64, tpu.core_type = #tpu.core_type<tc>, window_params = [{transform_indices = @transform_0, window_bounds = array<i64: 2, 16, 32>}, {transform_indices = @transform_1, window_bounds = array<i64: 2, 32>}, {pipeline_mode = #tpu.pipeline_mode<synchronous>, transform_indices = @transform_2, window_bounds = array<i64: 32, 32>}, {pipeline_mode = #tpu.pipeline_mode<synchronous>, transform_indices = @transform_3, window_bounds = array<i64: 1, 32>}, {pipeline_mode = #tpu.pipeline_mode<synchronous>, transform_indices = @transform_4, window_bounds = array<i64: 32, 32>}, {pipeline_mode = #tpu.pipeline_mode<synchronous>, transform_indices = @transform_5, window_bounds = array<i64: 1, 32>}, {pipeline_mode = #tpu.pipeline_mode<synchronous>, transform_indices = @transform_6, window_bounds = array<i64: 1, 32>}, {transform_indices = @transform_7, window_bounds = array<i64: 2, 32>}, {transform_indices = @transform_8, window_bounds = array<i64: 2, 16>}]} {
    %c0 = arith.constant 0 : index
    %c0_0 = arith.constant 0 : index
    %c0_1 = arith.constant 0 : index
    %0 = vector.load %arg1[%c0, %c0_0, %c0_1] : memref<2x16x32xbf16, #tpu.memory_space<vmem>>, vector<2x16x32xbf16>
    %1 = vector.shape_cast %0 : vector<2x16x32xbf16> to vector<32x32xbf16>
    %c0_2 = arith.constant 0 : index
    %c0_3 = arith.constant 0 : index
    %2 = vector.load %arg3[%c0_2, %c0_3] : memref<32x32xbf16, #tpu.memory_space<vmem>>, vector<32x32xbf16>
    %cst = arith.constant dense<0.000000e+00> : vector<32x32xf32>
    %3 = tpu.matmul %1, %2, %cst {dimension_numbers = #tpu.dot_dimension_numbers<[1], [0], [0], [1], [0, 0, 1, 1], [], []>} : vector<32x32xbf16>, vector<32x32xbf16>, vector<32x32xf32> -> vector<32x32xf32>
    %c0_4 = arith.constant 0 : index
    %c0_5 = arith.constant 0 : index
    %4 = vector.load %arg4[%c0_4, %c0_5] : memref<1x32xf32, #tpu.memory_space<vmem>>, vector<1x32xf32>
    %5 = vector.broadcast %4 : vector<1x32xf32> to vector<32x32xf32>
    %6 = arith.addf %3, %5 : vector<32x32xf32>
    %7 = vector.shape_cast %6 : vector<32x32xf32> to vector<2x16x32xf32>
    %c0_6 = arith.constant 0 : index
    %c0_7 = arith.constant 0 : index
    %8 = vector.load %arg2[%c0_6, %c0_7] : memref<2x32xf32, #tpu.memory_space<vmem>>, vector<2x32xf32>
    %9 = arith.truncf %8 : vector<2x32xf32> to vector<2x32xbf16>
    %c0_8 = arith.constant 0 : index
    %c0_9 = arith.constant 0 : index
    %10 = vector.load %arg5[%c0_8, %c0_9] : memref<32x32xbf16, #tpu.memory_space<vmem>>, vector<32x32xbf16>
    %cst_10 = arith.constant dense<0.000000e+00> : vector<2x32xf32>
    %11 = tpu.matmul %9, %10, %cst_10 {dimension_numbers = #tpu.dot_dimension_numbers<[1], [0], [0], [1], [0, 0, 1, 1], [], []>} : vector<2x32xbf16>, vector<32x32xbf16>, vector<2x32xf32> -> vector<2x32xf32>
    %c0_11 = arith.constant 0 : index
    %c0_12 = arith.constant 0 : index
    %12 = vector.load %arg6[%c0_11, %c0_12] : memref<1x32xf32, #tpu.memory_space<vmem>>, vector<1x32xf32>
    %13 = vector.broadcast %12 : vector<1x32xf32> to vector<2x32xf32>
    %14 = arith.addf %11, %13 : vector<2x32xf32>
    %15 = vector.shape_cast %14 : vector<2x32xf32> to vector<2x1x32xf32>
    %16 = vector.broadcast %15 : vector<2x1x32xf32> to vector<2x16x32xf32>
    %17 = arith.addf %7, %16 : vector<2x16x32xf32>
    %cst_13 = arith.constant 0.000000e+00 : f32
    %18 = vector.broadcast %cst_13 : f32 to vector<2x16x32xf32>
    %19 = arith.maximumf %17, %18 : vector<2x16x32xf32>
    %c0_14 = arith.constant 0 : index
    %c0_15 = arith.constant 0 : index
    %20 = vector.load %arg7[%c0_14, %c0_15] : memref<1x32xf32, #tpu.memory_space<vmem>>, vector<1x32xf32>
    %21 = vector.shape_cast %20 : vector<1x32xf32> to vector<1x1x32xf32>
    %22 = vector.broadcast %21 : vector<1x1x32xf32> to vector<2x16x32xf32>
    %23 = arith.mulf %19, %22 : vector<2x16x32xf32>
    %cst_16 = arith.constant dense<0.000000e+00> : vector<2x16xf32>
    %24 = vector.multi_reduction <add>, %23, %cst_16 [2] : vector<2x16x32xf32> to vector<2x16xf32>
    %cst_17 = arith.constant dense<0xFF800000> : vector<2xf32>
    %25 = vector.multi_reduction <maximumf>, %24, %cst_17 [1] : vector<2x16xf32> to vector<2xf32>
    %26 = vector.shape_cast %25 : vector<2xf32> to vector<2x1xf32>
    %27 = vector.broadcast %26 : vector<2x1xf32> to vector<2x16xf32>
    %28 = arith.subf %24, %27 : vector<2x16xf32>
    %29 = math.exp %28 : vector<2x16xf32>
    %cst_18 = arith.constant dense<0.000000e+00> : vector<2xf32>
    %30 = vector.multi_reduction <add>, %29, %cst_18 [1] : vector<2x16xf32> to vector<2xf32>
    %31 = vector.shape_cast %30 : vector<2xf32> to vector<2x1xf32>
    %32 = tpu.reciprocal %31 {approx = true} : vector<2x1xf32> -> vector<2x1xf32>
    %33 = vector.broadcast %32 : vector<2x1xf32> to vector<2x16xf32>
    %34 = arith.mulf %29, %33 : vector<2x16xf32>
    %c0_19 = arith.constant 0 : index
    %c0_20 = arith.constant 0 : index
    %35 = vector.load %arg9[%c0_19, %c0_20] : memref<2x16xf32, #tpu.memory_space<vmem>>, vector<2x16xf32>
    tpu.vector_store %arg9[%c0_19, %c0_20], %34 {strides = array<i32>} : memref<2x16xf32, #tpu.memory_space<vmem>>, vector<2x16xf32>,
    %36 = arith.truncf %34 : vector<2x16xf32> to vector<2x16xbf16>
    %37 = vector.extract_strided_slice %36 {offsets = [0, 0], sizes = [1, 16], strides = [1, 1]} : vector<2x16xbf16> to vector<1x16xbf16>
    %38 = vector.extract_strided_slice %0 {offsets = [0, 0, 0], sizes = [1, 16, 32], strides = [1, 1, 1]} : vector<2x16x32xbf16> to vector<1x16x32xbf16>
    %39 = vector.shape_cast %38 : vector<1x16x32xbf16> to vector<16x32xbf16>
    %cst_21 = arith.constant dense<0.000000e+00> : vector<1x32xf32>
    %40 = tpu.matmul %37, %39, %cst_21 {dimension_numbers = #tpu.dot_dimension_numbers<[1], [0], [0], [1], [0, 0, 1, 1], [], []>} : vector<1x16xbf16>, vector<16x32xbf16>, vector<1x32xf32> -> vector<1x32xf32>
    %41 = vector.extract_strided_slice %36 {offsets = [1, 0], sizes = [1, 16], strides = [1, 1]} : vector<2x16xbf16> to vector<1x16xbf16>
    %42 = vector.extract_strided_slice %0 {offsets = [1, 0, 0], sizes = [1, 16, 32], strides = [1, 1, 1]} : vector<2x16x32xbf16> to vector<1x16x32xbf16>
    %43 = vector.shape_cast %42 : vector<1x16x32xbf16> to vector<16x32xbf16>
    %cst_22 = arith.constant dense<0.000000e+00> : vector<1x32xf32>
    %44 = tpu.matmul %41, %43, %cst_22 {dimension_numbers = #tpu.dot_dimension_numbers<[1], [0], [0], [1], [0, 0, 1, 1], [], []>} : vector<1x16xbf16>, vector<16x32xbf16>, vector<1x32xf32> -> vector<1x32xf32>
    %45 = tpu.concatenate %40, %44 in 0 : vector<1x32xf32>, vector<1x32xf32> -> vector<2x32xf32>
    %c0_23 = arith.constant 0 : index
    %c0_24 = arith.constant 0 : index
    %46 = vector.load %arg8[%c0_23, %c0_24] : memref<2x32xf32, #tpu.memory_space<vmem>>, vector<2x32xf32>
    tpu.vector_store %arg8[%c0_23, %c0_24], %45 {strides = array<i32>} : memref<2x32xf32, #tpu.memory_space<vmem>>, vector<2x32xf32>,
    return
  }
  func.func @transform_0(%arg0: i32) -> (i32, i32, i32) {
    %c0_i32 = arith.constant 0 : i32
    %c0_i32_0 = arith.constant 0 : i32
    %c0_i32_1 = arith.constant 0 : i32
    return %arg0, %c0_i32, %c0_i32_0 : i32, i32, i32
  }
  func.func @transform_1(%arg0: i32) -> (i32, i32) {
    %c0_i32 = arith.constant 0 : i32
    %c0_i32_0 = arith.constant 0 : i32
    return %arg0, %c0_i32 : i32, i32
  }
  func.func @transform_2(%arg0: i32) -> (i32, i32) {
    %c0_i32 = arith.constant 0 : i32
    %c0_i32_0 = arith.constant 0 : i32
    %c0_i32_1 = arith.constant 0 : i32
    return %c0_i32, %c0_i32_0 : i32, i32
  }
  func.func @transform_3(%arg0: i32) -> (i32, i32) {
    %c0_i32 = arith.constant 0 : i32
    %c0_i32_0 = arith.constant 0 : i32
    %c0_i32_1 = arith.constant 0 : i32
    return %c0_i32, %c0_i32_0 : i32, i32
  }
  func.func @transform_4(%arg0: i32) -> (i32, i32) {
    %c0_i32 = arith.constant 0 : i32
    %c0_i32_0 = arith.constant 0 : i32
    %c0_i32_1 = arith.constant 0 : i32
    return %c0_i32, %c0_i32_0 : i32, i32
  }
  func.func @transform_5(%arg0: i32) -> (i32, i32) {
    %c0_i32 = arith.constant 0 : i32
    %c0_i32_0 = arith.constant 0 : i32
    %c0_i32_1 = arith.constant 0 : i32
    return %c0_i32, %c0_i32_0 : i32, i32
  }
  func.func @transform_6(%arg0: i32) -> (i32, i32) {
    %c0_i32 = arith.constant 0 : i32
    %c0_i32_0 = arith.constant 0 : i32
    %c0_i32_1 = arith.constant 0 : i32
    return %c0_i32, %c0_i32_0 : i32, i32
  }
  func.func @transform_7(%arg0: i32) -> (i32, i32) {
    %c0_i32 = arith.constant 0 : i32
    %c0_i32_0 = arith.constant 0 : i32
    return %arg0, %c0_i32 : i32, i32
  }
  func.func @transform_8(%arg0: i32) -> (i32, i32) {
    %c0_i32 = arith.constant 0 : i32
    %c0_i32_0 = arith.constant 0 : i32
    return %arg0, %c0_i32 : i32, i32
  }
}

</mosaic_0001>

<llo_original>
// kernel: attention_forward.1
$region0: #{attention_forward.1}
  #allocation0 [shape = 'u32[]', space=smem, size = 0x4, offset = 0x4, fixed_abs, tag = 'smem constant byte address 0x4 - core index']
  #allocation1 [shape = 'u32[144,128]{1,0:T(1,128)}', space=vmem, size = 0x12000, scoped, tag = 'internal scratch']
  %s0 = inlined_call_operand.vmem [shape: bf16[2,16,32], index: 0, kind: input, shape index: {}]
  %s1 = inlined_call_operand.vmem [shape: f32[2,32], index: 1, kind: input, shape index: {}]
  %s2 = inlined_call_operand.vmem [shape: bf16[32,32], index: 2, kind: input, shape index: {}]
  %s3 = inlined_call_operand.vmem [shape: f32[1,32], index: 3, kind: input, shape index: {}]
  %s4 = inlined_call_operand.vmem [shape: bf16[32,32], index: 4, kind: input, shape index: {}]
  %s5 = inlined_call_operand.vmem [shape: f32[1,32], index: 5, kind: input, shape index: {}]
  %s6 = inlined_call_operand.vmem [shape: f32[1,32], index: 6, kind: input, shape index: {}]
  %s7 = inlined_call_operand.hbm [shape: f32[2,32], index: 7, kind: output, shape index: {0}]
  %s8 = inlined_call_operand.hbm [shape: f32[2,16], index: 8, kind: output, shape index: {1}]
  %9 = xla_tuple %s7, %s8
  %s10 = sld [smem:[#allocation0]]
  $region46: #{attention_forward.1} parent=0
    _
  %s12 = ssub.s32 1, %s10
  %s13 = scalar_select 0, %s12, %s10
  $region1: #{attention_forward.1} parent=0
    #allocation2 [shape = 'u8[1024]{0}', space=vmem, size = 0x400, scoped, tag = 'output window, operand 0, single buffered']
    #allocation3 [shape = 's32[1]{0}', space=sflag, size = 0x4, scoped, tag = 'scoped memory for attention_forward.1']
    #allocation4 [shape = 'u8[1024]{0}', space=vmem, size = 0x400, scoped, tag = 'output window, operand 1, single buffered']
    #allocation5 [shape = 's32[1]{0}', space=sflag, size = 0x4, scoped, tag = 'scoped memory for attention_forward.1']
    %14 = vsyncpa [#allocation3], 0
    %15 = vsyncpa [#allocation5], 0
    // Predicated region
    $region2: #{attention_forward.1} parent=1 // pred_check
      _
    $region3: #{attention_forward.1} parent=1 // pred_check_branch
      %17 = sbr.rel (0) target = $region5
    $region4: #{attention_forward.1} parent=1 // pred_region
      _
    $region5: #{attention_forward.1} parent=1 // pred_fallthru
      _
    // Predicated region
    $region6: #{attention_forward.1} parent=1 // pred_check
      _
    $region7: #{attention_forward.1} parent=1 // pred_check_branch
      %19 = sbr.rel (0) target = $region9
    $region8: #{attention_forward.1} parent=1 // pred_region
      _
    $region9: #{attention_forward.1} parent=1 // pred_fallthru
      _
    // Predicated region
    $region10: #{attention_forward.1} parent=1 // pred_check
      _
    $region11: #{attention_forward.1} parent=1 // pred_check_branch
      %21 = sbr.rel (0) target = $region13
    $region12: #{attention_forward.1} parent=1 // pred_region
      _
    $region13: #{attention_forward.1} parent=1 // pred_fallthru
      _
    // Predicated region
    $region14: #{attention_forward.1} parent=1 // pred_check
      _
    $region15: #{attention_forward.1} parent=1 // pred_check_branch
      %23 = sbr.rel (0) target = $region17
    $region16: #{attention_forward.1} parent=1 // pred_region
      _
    $region17: #{attention_forward.1} parent=1 // pred_fallthru
      _
    // Predicated region
    $region18: #{attention_forward.1} parent=1 // pred_check
      _
    $region19: #{attention_forward.1} parent=1 // pred_check_branch
      %25 = sbr.rel (0) target = $region21
    $region20: #{attention_forward.1} parent=1 // pred_region
      _
    $region21: #{attention_forward.1} parent=1 // pred_fallthru
      _
    // Predicated region
    $region22: #{attention_forward.1} parent=1 // pred_check
      _
    $region23: #{attention_forward.1} parent=1 // pred_check_branch
      %27 = sbr.rel (0) target = $region25
    $region24: #{attention_forward.1} parent=1 // pred_region
      _
    $region25: #{attention_forward.1} parent=1 // pred_fallthru
      _
    // Predicated region
    $region26: #{attention_forward.1} parent=1 // pred_check
      _
    $region27: #{attention_forward.1} parent=1 // pred_check_branch
      %29 = sbr.rel (0) target = $region29
    $region28: #{attention_forward.1} parent=1 // pred_region
      _
    $region29: #{attention_forward.1} parent=1 // pred_fallthru
      _
    %v31 = vld [vmem:[%s0] sm:$0xf]
    %v32 = vld [vmem:[%s0 + $0x4] sm:$0xf]
    %v33 = vld [vmem:[%s0 + $0x8] sm:$0xf]
    %v34 = vld [vmem:[%s0 + $0xc] sm:$0xf]
    %v35 = vld [vmem:[%s2] sm:$0xf]
    %v36 = vld [vmem:[%s2 + $0x4] sm:$0xf]
    %v37 = vld [vmem:[%s2 + $0x8] sm:$0xf]
    %v38 = vld [vmem:[%s2 + $0xc] sm:$0xf]
    %v39 = vld [vmem:[%s3] sm:$0x1]
    %v41 = vlaneseq
    %v42 = vshrl.u32 %v41, 7
    %v43 = vsub.s32 0, %v42
    %v44 = vrot.slane %v39, %v43
    %v50 = vunpack.c.l.b16 %v31
    %v51 = vunpack.c.l.b16 %v32
    %v52 = vunpack.c.l.b16 %v33
    %v53 = vunpack.c.l.b16 %v34
    %v54 = vpack.c.b16 %v51, %v50
    %v55 = vpack.c.b16 %v53, %v52
    %v60 = vunpack.c.l.b16 %v35
    %v61 = vunpack.c.l.b16 %v36
    %v62 = vunpack.c.l.b16 %v37
    %v63 = vunpack.c.l.b16 %v38
    %v64 = vpack.c.b16 %v61, %v60
    %v65 = vpack.c.b16 %v63, %v62
    %vm68 = vcmask 261120
    %v70 = vsel %vm68, %v54, 0
    %v73 = vsel %vm68, %v55, 0
    %75 = vmatprep.subr.bf16.mxu0 0
    %76 = vmatpush1.bf16.msra.mxu0 %v64
    %77 = vmatprep.subr.bf16.mxu0 0
    %78 = vmatpush1.bf16.msra.mxu0 %v65
    %79 = vmatprep.subr.bf16.mxu0 0
    %80 = vmatpush1.bf16.msra.mxu0 0
    %81 = vmatprep.subr.bf16.mxu0 0
    %82 = vmatpush1.bf16.msra.mxu0 0
    %83 = vmatprep.subr.bf16.mxu0 0
    %84 = vmatpush1.bf16.msra.mxu0 0
    %85 = vmatprep.subr.bf16.mxu0 0
    %86 = vmatpush1.bf16.msra.mxu0 0
    %87 = vmatprep.subr.bf16.mxu0 0
    %88 = vmatpush1.bf16.msra.mxu0 0
    %89 = vmatprep.subr.bf16.mxu0 0
    %90 = vmatpush1.bf16.msra.mxu0 0
    %91 = vmatprep.subr.bf16.mxu0 0
    %92 = vmatpush1.bf16.msra.mxu0 0
    %93 = vmatprep.subr.bf16.mxu0 0
    %94 = vmatpush1.bf16.msra.mxu0 0
    %95 = vmatprep.subr.bf16.mxu0 0
    %96 = vmatpush1.bf16.msra.mxu0 0
    %97 = vmatprep.subr.bf16.mxu0 0
    %98 = vmatpush1.bf16.msra.mxu0 0
    %99 = vmatprep.subr.bf16.mxu0 0
    %100 = vmatpush1.bf16.msra.mxu0 0
    %101 = vmatprep.subr.bf16.mxu0 0
    %102 = vmatpush1.bf16.msra.mxu0 0
    %103 = vmatprep.subr.bf16.mxu0 0
    %104 = vmatpush1.bf16.msra.mxu0 0
    %105 = vmatprep.subr.bf16.mxu0 0
    %106 = vmatpush1.bf16.msra.mxu0 0
    %107 = vmatprep.mubr.bf16.mxu0 0
    %108 = vmatmul.mubr.bf16.gmra.mrb[0].mxu0 %v70
    %v109 = vpop.f32.mrb[0].mxu0
    %v110 = vadd.f32 %v44, %v109
    %v111 = vpop.f32.mrb[0].mxu0
    %v112 = vpop.f32.mrb[0].mxu0
    %v113 = vadd.f32 %v44, %v112
    %v114 = vpop.f32.mrb[0].mxu0
    %115 = vmatprep.mubr.bf16.mxu0 0
    %116 = vmatmul.mubr.bf16.gmra.mrb[0].mxu0 %v73
    %v117 = vpop.f32.mrb[0].mxu0
    %v118 = vadd.f32 %v44, %v117
    %v119 = vpop.f32.mrb[0].mxu0
    %v120 = vpop.f32.mrb[0].mxu0
    %v121 = vadd.f32 %v44, %v120
    %v122 = vpop.f32.mrb[0].mxu0
    %123 = vdwg.mxu0
    %v124 = vld [vmem:[%s1] sm:$0x3]
    %v125 = vpack.c.bf16 %v124, %v124
    %v126 = vld [vmem:[%s4] sm:$0xf]
    %v127 = vld [vmem:[%s4 + $0x4] sm:$0xf]
    %v128 = vld [vmem:[%s4 + $0x8] sm:$0xf]
    %v129 = vld [vmem:[%s4 + $0xc] sm:$0xf]
    %v130 = vld [vmem:[%s5] sm:$0x1]
    %v132 = vlaneseq
    %v133 = vshrl.u32 %v132, 7
    %v134 = vsub.s32 0, %v133
    %v135 = vrot.slane %v130, %v134
    %v141 = vunpack.c.l.b16 %v126
    %v142 = vunpack.c.l.b16 %v127
    %v143 = vunpack.c.l.b16 %v128
    %v144 = vunpack.c.l.b16 %v129
    %v145 = vpack.c.b16 %v142, %v141
    %v146 = vpack.c.b16 %v144, %v143
    %v150 = vsel %vm68, %v125, 0
    %152 = vmatprep.subr.bf16.mxu0 0
    %153 = vmatpush1.bf16.msra.mxu0 %v145
    %154 = vmatprep.subr.bf16.mxu0 0
    %155 = vmatpush1.bf16.msra.mxu0 %v146
    %156 = vmatprep.subr.bf16.mxu0 0
    %157 = vmatpush1.bf16.msra.mxu0 0
    %158 = vmatprep.subr.bf16.mxu0 0
    %159 = vmatpush1.bf16.msra.mxu0 0
    %160 = vmatprep.subr.bf16.mxu0 0
    %161 = vmatpush1.bf16.msra.mxu0 0
    %162 = vmatprep.subr.bf16.mxu0 0
    %163 = vmatpush1.bf16.msra.mxu0 0
    %164 = vmatprep.subr.bf16.mxu0 0
    %165 = vmatpush1.bf16.msra.mxu0 0
    %166 = vmatprep.subr.bf16.mxu0 0
    %167 = vmatpush1.bf16.msra.mxu0 0
    %168 = vmatprep.subr.bf16.mxu0 0
    %169 = vmatpush1.bf16.msra.mxu0 0
    %170 = vmatprep.subr.bf16.mxu0 0
    %171 = vmatpush1.bf16.msra.mxu0 0
    %172 = vmatprep.subr.bf16.mxu0 0
    %173 = vmatpush1.bf16.msra.mxu0 0
    %174 = vmatprep.subr.bf16.mxu0 0
    %175 = vmatpush1.bf16.msra.mxu0 0
    %176 = vmatprep.subr.bf16.mxu0 0
    %177 = vmatpush1.bf16.msra.mxu0 0
    %178 = vmatprep.subr.bf16.mxu0 0
    %179 = vmatpush1.bf16.msra.mxu0 0
    %180 = vmatprep.subr.bf16.mxu0 0
    %181 = vmatpush1.bf16.msra.mxu0 0
    %182 = vmatprep.subr.bf16.mxu0 0
    %183 = vmatpush1.bf16.msra.mxu0 0
    %184 = vmatprep.mubr.bf16.mxu0 0
    %185 = vmatmul.mubr.bf16.gmra.mrb[0].mxu0 %v150
    %v186 = vpop.f32.mrb[0].mxu0
    %v187 = vadd.f32 %v135, %v186
    %v188 = vpop.f32.mrb[0].mxu0
    %v189 = vpop.f32.mrb[0].mxu0
    %v190 = vpop.f32.mrb[0].mxu0
    %191 = vdwg.mxu0
    %v194 = vunpack.c.l.s4 1966171168
    %v195 = vunpack.c.0.s8 %v194
    %v196 = vlaneseq
    %v197 = vshrl.u32 %v196, 7
    %v198 = vsub.s32 %v195, %v197
    %v199 = vrot.slane %v187, %v198
    %v200 = vcombine.high %v199, %v199
    %v202 = vunpack.c.l.s4 1966171168
    %v203 = vunpack.c.0.s8 %v202
    %v204 = vlaneseq
    %v205 = vshrl.u32 %v204, 7
    %v206 = vsub.s32 %v203, %v205
    %v207 = vrot.slane %v199, %v206
    %v209 = vunpack.c.l.s4 1966171168
    %v210 = vunpack.c.0.s8 %v209
    %v211 = vlaneseq
    %v212 = vshrl.u32 %v211, 7
    %v213 = vsub.s32 %v210, %v212
    %v214 = vrot.slane %v200, %v213
    %v215 = vlaneseq
    %v216 = vshrl.u32 %v215, 7
    %v217 = vsub.s32 0, %v216
    %v218 = vrot.slane %v207, %v217
    %v219 = vlaneseq
    %v220 = vshrl.u32 %v219, 7
    %v221 = vsub.s32 0, %v220
    %v222 = vrot.slane %v214, %v221
    %v225 = vadd.f32 %v110, %v218
    %v226 = vadd.f32 %v113, %v218
    %v227 = vadd.f32 %v118, %v222
    %v228 = vadd.f32 %v121, %v222
    %v229 = vmax.f32 %v225, 0.0
    %v230 = vmax.f32 %v226, 0.0
    %v231 = vmax.f32 %v227, 0.0
    %v232 = vmax.f32 %v228, 0.0
    %v233 = vld [vmem:[%s6] sm:$0x1]
    %v235 = vlaneseq
    %v236 = vshrl.u32 %v235, 7
    %v237 = vsub.s32 0, %v236
    %v238 = vrot.slane %v233, %v237
    %v240 = vmul.f32 %v229, %v238
    %v241 = vmul.f32 %v230, %v238
    %v242 = vmul.f32 %v231, %v238
    %v243 = vmul.f32 %v232, %v238
    %v244 = vsel %vm68, %v240, 0.0
    %245 = vadd.xlane.f32.xlu0 %v244
    %v246 = vpop.xlane.xlu0 %245
    %v247 = vsel %vm68, %v241, 0.0
    %248 = vadd.xlane.f32.xlu0 %v247
    %v249 = vpop.xlane.xlu0 %248
    %v250 = vsel %vm68, %v242, 0.0
    %251 = vadd.xlane.f32.xlu0 %v250
    %v252 = vpop.xlane.xlu0 %251
    %v253 = vsel %vm68, %v243, 0.0
    %254 = vadd.xlane.f32.xlu0 %v253
    %v255 = vpop.xlane.xlu0 %254
    %v260 = vlaneseq
    %v261 = vand.u32 %v260, 127
    %v262 = vlaneseq
    %v263 = vshrl.u32 %v262, 7
    %v264 = vsub.s32 %v261, %v263
    %v265 = vrot.slane %v246, %v264
    %v266 = vadd.s32 %v261, 4294967288
    %v267 = vlaneseq
    %v268 = vshrl.u32 %v267, 7
    %v269 = vsub.s32 %v266, %v268
    %v270 = vrot.slane %v249, %v269
    %vm271 = vcmask 130112
    %v272 = vsel %vm271, %v270, %v265
    %v273 = vlaneseq
    %v274 = vshrl.u32 %v273, 7
    %v275 = vsub.s32 %v261, %v274
    %v276 = vrot.slane %v252, %v275
    %v277 = vlaneseq
    %v278 = vshrl.u32 %v277, 7
    %v279 = vsub.s32 %v266, %v278
    %v280 = vrot.slane %v255, %v279
    %v281 = vsel %vm271, %v280, %v276
    %vm282 = vcmask 1041409
    %v283 = vsel %vm282, %v281, %v272
    %vm285 = vcmask 123904
    %v286 = vsel %vm285, %v283, -inf
    %287 = vmax.xlane.f32.xlu0 %v286
    %v288 = vpop.xlane.xlu0 %287
    %v290 = vlaneseq
    %v291 = vshrl.u32 %v290, 7
    %v292 = vsub.s32 0, %v291
    %v293 = vrot.slane %v288, %v292
    %v294 = vlaneseq
    %v295 = vshrl.u32 %v294, 7
    %v296 = vsub.s32 1, %v295
    %v297 = vrot.slane %v288, %v296
    %v300 = vsub.f32 %v246, %v293
    %v301 = vsub.f32 %v249, %v293
    %v302 = vsub.f32 %v252, %v297
    %v303 = vsub.f32 %v255, %v297
    %v304 = vmul.f32 %v300, 1.442695
    %v305 = vpow.pop %v304
    %v306 = vmul.f32 %v301, 1.442695
    %v307 = vpow.pop %v306
    %v308 = vmul.f32 %v302, 1.442695
    %v309 = vpow.pop %v308
    %v310 = vmul.f32 %v303, 1.442695
    %v311 = vpow.pop %v310
    %316 = vset.pattern.permute.xlu0 0
    %317 = vperm.xlu0 %316, %v305
    %v318 = vpop.permute.xlu0 %317
    %319 = vset.pattern.permute.xlu0 0
    %320 = vperm.xlu0 %319, %v307
    %v321 = vpop.permute.xlu0 %320
    %322 = vset.pattern.permute.xlu0 0
    %323 = vperm.xlu0 %322, %v309
    %v324 = vpop.permute.xlu0 %323
    %325 = vset.pattern.permute.xlu0 0
    %326 = vperm.xlu0 %325, %v311
    %v327 = vpop.permute.xlu0 %326
    %v328 = vlaneseq
    %v329 = vshrl.u32 %v328, 7
    %v330 = vsub.s32 %v261, %v329
    %v331 = vrot.slane %v318, %v330
    %v332 = vlaneseq
    %v333 = vshrl.u32 %v332, 7
    %v334 = vsub.s32 %v266, %v333
    %v335 = vrot.slane %v321, %v334
    %v336 = vsel %vm271, %v335, %v331
    %v337 = vlaneseq
    %v338 = vshrl.u32 %v337, 7
    %v339 = vsub.s32 %v261, %v338
    %v340 = vrot.slane %v324, %v339
    %v341 = vlaneseq
    %v342 = vshrl.u32 %v341, 7
    %v343 = vsub.s32 %v266, %v342
    %v344 = vrot.slane %v327, %v343
    %v345 = vsel %vm271, %v344, %v340
    %v346 = vsel %vm282, %v345, %v336
    %v348 = vsel %vm285, %v346, 0.0
    %349 = vadd.xlane.f32.xlu0 %v348
    %v350 = vpop.xlane.xlu0 %349
    %v351 = vrcp.pop %v350
    %v353 = vlaneseq
    %v354 = vshrl.u32 %v353, 7
    %v355 = vsub.s32 0, %v354
    %v356 = vrot.slane %v351, %v355
    %v357 = vlaneseq
    %v358 = vshrl.u32 %v357, 7
    %v359 = vsub.s32 1, %v358
    %v360 = vrot.slane %v351, %v359
    %v363 = vmul.f32 %v305, %v356
    %v364 = vmul.f32 %v307, %v356
    %v365 = vmul.f32 %v309, %v360
    %v366 = vmul.f32 %v311, %v360
    %371 = vset.pattern.permute.xlu0 0
    %372 = vperm.xlu0 %371, %v363
    %v373 = vpop.permute.xlu0 %372
    %374 = vset.pattern.permute.xlu0 0
    %375 = vperm.xlu0 %374, %v364
    %v376 = vpop.permute.xlu0 %375
    %377 = vset.pattern.permute.xlu0 0
    %378 = vperm.xlu0 %377, %v365
    %v379 = vpop.permute.xlu0 %378
    %380 = vset.pattern.permute.xlu0 0
    %381 = vperm.xlu0 %380, %v366
    %v382 = vpop.permute.xlu0 %381
    %v383 = vlaneseq
    %v384 = vshrl.u32 %v383, 7
    %v385 = vsub.s32 %v261, %v384
    %v386 = vrot.slane %v373, %v385
    %v387 = vlaneseq
    %v388 = vshrl.u32 %v387, 7
    %v389 = vsub.s32 %v266, %v388
    %v390 = vrot.slane %v376, %v389
    %v391 = vsel %vm271, %v390, %v386
    %v392 = vlaneseq
    %v393 = vshrl.u32 %v392, 7
    %v394 = vsub.s32 %v261, %v393
    %v395 = vrot.slane %v379, %v394
    %v396 = vlaneseq
    %v397 = vshrl.u32 %v396, 7
    %v398 = vsub.s32 %v266, %v397
    %v399 = vrot.slane %v382, %v398
    %v400 = vsel %vm271, %v399, %v395
    %v401 = vsel %vm282, %v400, %v391
    %403 = vst.msk [vmem:[#allocation4] sm:$0x3] %vm285, %v401
    %v404 = vpack.c.bf16 %v364, %v363
    %v405 = vpack.c.bf16 %v366, %v365
    %v407 = vunpack.c.l.b16 %v404
    %v408 = vunpack.c.h.b16 %v404
    %409 = vset.pattern.permute.xlu0 0
    %410 = vperm.xlu0 %409, %v407
    %v411 = vpop.permute.xlu0 %410
    %412 = vset.pattern.permute.xlu0 0
    %413 = vperm.xlu0 %412, %v408
    %v414 = vpop.permute.xlu0 %413
    %v415 = vlaneseq
    %v416 = vshrl.u32 %v415, 7
    %v417 = vsub.s32 %v261, %v416
    %v418 = vrot.slane %v411, %v417
    %v419 = vlaneseq
    %v420 = vshrl.u32 %v419, 7
    %v421 = vsub.s32 %v266, %v420
    %v422 = vrot.slane %v414, %v421
    %v423 = vsel %vm271, %v422, %v418
    %v424 = vpack.c.b16 %v423, %v423
    %vm426 = vcmask 130048
    %v428 = vsel %vm426, %v424, 0
    %430 = vmatprep.subr.bf16.mxu0 0
    %431 = vmatpush1.bf16.msra.mxu0 %v54
    %432 = vmatprep.subr.bf16.mxu0 0
    %433 = vmatpush1.bf16.msra.mxu0 0
    %434 = vmatprep.subr.bf16.mxu0 0
    %435 = vmatpush1.bf16.msra.mxu0 0
    %436 = vmatprep.subr.bf16.mxu0 0
    %437 = vmatpush1.bf16.msra.mxu0 0
    %438 = vmatprep.subr.bf16.mxu0 0
    %439 = vmatpush1.bf16.msra.mxu0 0
    %440 = vmatprep.subr.bf16.mxu0 0
    %441 = vmatpush1.bf16.msra.mxu0 0
    %442 = vmatprep.subr.bf16.mxu0 0
    %443 = vmatpush1.bf16.msra.mxu0 0
    %444 = vmatprep.subr.bf16.mxu0 0
    %445 = vmatpush1.bf16.msra.mxu0 0
    %446 = vmatprep.subr.bf16.mxu0 0
    %447 = vmatpush1.bf16.msra.mxu0 0
    %448 = vmatprep.subr.bf16.mxu0 0
    %449 = vmatpush1.bf16.msra.mxu0 0
    %450 = vmatprep.subr.bf16.mxu0 0
    %451 = vmatpush1.bf16.msra.mxu0 0
    %452 = vmatprep.subr.bf16.mxu0 0
    %453 = vmatpush1.bf16.msra.mxu0 0
    %454 = vmatprep.subr.bf16.mxu0 0
    %455 = vmatpush1.bf16.msra.mxu0 0
    %456 = vmatprep.subr.bf16.mxu0 0
    %457 = vmatpush1.bf16.msra.mxu0 0
    %458 = vmatprep.subr.bf16.mxu0 0
    %459 = vmatpush1.bf16.msra.mxu0 0
    %460 = vmatprep.subr.bf16.mxu0 0
    %461 = vmatpush1.bf16.msra.mxu0 0
    %462 = vmatprep.mubr.bf16.mxu0 0
    %463 = vmatmul.mubr.bf16.gmra.mrb[0].mxu0 %v428
    %v464 = vpop.f32.mrb[0].mxu0
    %v465 = vadd.f32 0.0, %v464
    %v466 = vpop.f32.mrb[0].mxu0
    %v467 = vpop.f32.mrb[0].mxu0
    %v468 = vpop.f32.mrb[0].mxu0
    %469 = vdwg.mxu0
    %v471 = vunpack.c.l.b16 %v405
    %v472 = vunpack.c.h.b16 %v405
    %473 = vset.pattern.permute.xlu0 0
    %474 = vperm.xlu0 %473, %v471
    %v475 = vpop.permute.xlu0 %474
    %476 = vset.pattern.permute.xlu0 0
    %477 = vperm.xlu0 %476, %v472
    %v478 = vpop.permute.xlu0 %477
    %v479 = vlaneseq
    %v480 = vshrl.u32 %v479, 7
    %v481 = vsub.s32 %v261, %v480
    %v482 = vrot.slane %v475, %v481
    %v483 = vlaneseq
    %v484 = vshrl.u32 %v483, 7
    %v485 = vsub.s32 %v266, %v484
    %v486 = vrot.slane %v478, %v485
    %v487 = vsel %vm271, %v486, %v482
    %v488 = vpack.c.b16 %v487, %v487
    %v491 = vsel %vm426, %v488, 0
    %493 = vmatprep.subr.bf16.mxu0 0
    %494 = vmatpush1.bf16.msra.mxu0 %v55
    %495 = vmatprep.subr.bf16.mxu0 0
    %496 = vmatpush1.bf16.msra.mxu0 0
    %497 = vmatprep.subr.bf16.mxu0 0
    %498 = vmatpush1.bf16.msra.mxu0 0
    %499 = vmatprep.subr.bf16.mxu0 0
    %500 = vmatpush1.bf16.msra.mxu0 0
    %501 = vmatprep.subr.bf16.mxu0 0
    %502 = vmatpush1.bf16.msra.mxu0 0
    %503 = vmatprep.subr.bf16.mxu0 0
    %504 = vmatpush1.bf16.msra.mxu0 0
    %505 = vmatprep.subr.bf16.mxu0 0
    %506 = vmatpush1.bf16.msra.mxu0 0
    %507 = vmatprep.subr.bf16.mxu0 0
    %508 = vmatpush1.bf16.msra.mxu0 0
    %509 = vmatprep.subr.bf16.mxu0 0
    %510 = vmatpush1.bf16.msra.mxu0 0
    %511 = vmatprep.subr.bf16.mxu0 0
    %512 = vmatpush1.bf16.msra.mxu0 0
    %513 = vmatprep.subr.bf16.mxu0 0
    %514 = vmatpush1.bf16.msra.mxu0 0
    %515 = vmatprep.subr.bf16.mxu0 0
    %516 = vmatpush1.bf16.msra.mxu0 0
    %517 = vmatprep.subr.bf16.mxu0 0
    %518 = vmatpush1.bf16.msra.mxu0 0
    %519 = vmatprep.subr.bf16.mxu0 0
    %520 = vmatpush1.bf16.msra.mxu0 0
    %521 = vmatprep.subr.bf16.mxu0 0
    %522 = vmatpush1.bf16.msra.mxu0 0
    %523 = vmatprep.subr.bf16.mxu0 0
    %524 = vmatpush1.bf16.msra.mxu0 0
    %525 = vmatprep.mubr.bf16.mxu0 0
    %526 = vmatmul.mubr.bf16.gmra.mrb[0].mxu0 %v491
    %v527 = vpop.f32.mrb[0].mxu0
    %v528 = vadd.f32 0.0, %v527
    %v529 = vpop.f32.mrb[0].mxu0
    %v530 = vpop.f32.mrb[0].mxu0
    %v531 = vpop.f32.mrb[0].mxu0
    %532 = vdwg.mxu0
    %v534 = vrot.slane %v528, 7
    %vm536 = vcmask 1040384
    %v537 = vsel %vm536, %v465, %v534
    %vm538 = vcmask 254976
    %539 = vst.msk [vmem:[#allocation2] sm:$0x3] %vm538, %v537
    // Predicated region
    $region30: #{attention_forward.1} parent=1 // pred_check
      _
    $region31: #{attention_forward.1} parent=1 // pred_check_branch
      %541 = sbr.rel (0) target = $region33
    $region32: #{attention_forward.1} parent=1 // pred_region
      %s543 = ssub.s32 32, 32
      %544 = vsyncadd [#allocation3], %s543
      %s546 = sshll.u32 [#allocation2], 4
      %s547 = int_to_ptr.vmem [resolvable:$true] %s546
      %549 = dma.vmem_to_hbm [thread:$0]  %s547, 32, %s7, [#allocation3]
    $region33: #{attention_forward.1} parent=1 // pred_fallthru
      _
    // Predicated region
    $region34: #{attention_forward.1} parent=1 // pred_check
      _
    $region35: #{attention_forward.1} parent=1 // pred_check_branch
      %551 = sbr.rel (0) target = $region37
    $region36: #{attention_forward.1} parent=1 // pred_region
      %s553 = ssub.s32 32, 32
      %554 = vsyncadd [#allocation5], %s553
      %s556 = sshll.u32 [#allocation4], 4
      %s557 = int_to_ptr.vmem [resolvable:$true] %s556
      %559 = dma.vmem_to_hbm [thread:$0]  %s557, 32, %s8, [#allocation5]
    $region37: #{attention_forward.1} parent=1 // pred_fallthru
      _
    // Predicated region
    $region38: #{attention_forward.1} parent=1 // pred_check
      _
    $region39: #{attention_forward.1} parent=1 // pred_check_branch
      %561 = sbr.rel (0) target = $region41
    $region40: #{attention_forward.1} parent=1 // pred_region
      %562 = dma.done [#allocation3], 32
    $region41: #{attention_forward.1} parent=1 // pred_fallthru
      _
    // Predicated region
    $region42: #{attention_forward.1} parent=1 // pred_check
      _
    $region43: #{attention_forward.1} parent=1 // pred_check_branch
      %564 = sbr.rel (0) target = $region45
    $region44: #{attention_forward.1} parent=1 // pred_region
      %565 = dma.done [#allocation5], 32
    $region45: #{attention_forward.1} parent=1 // pred_fallthru
      _
    %566 = vsyncpa [#allocation3], 1
    %567 = vsyncpa [#allocation5], 1

</llo_original>
